<compile_context>
chip_gen: v6e
topology: v6e:2x2x1
jax: 0.10.0
libtpu: 0.0.40
codegen_flags: <defaults>
</compile_context>

<pallas_src>
import math

import jax
import jax.numpy as jnp
from jax.experimental import pallas as pl
from jax.experimental.pallas import tpu as pltpu

_LN_EPS = 1e-5


def _layernorm(x, gamma, beta, eps=_LN_EPS):
    mu = jnp.mean(x, axis=-1, keepdims=True)
    var = jnp.mean((x - mu) ** 2, axis=-1, keepdims=True)
    return (x - mu) * jax.lax.rsqrt(var + eps) * gamma + beta


# ---------------------------------------------------------------------------
# Probe: is pipeline_mode=pl.Buffered(1) (single-buffered constant weights)
# supported by this JAX/Mosaic build?  Cached; falls back to default buffering.
# ---------------------------------------------------------------------------
_BUFFERED1 = None


def _buffered1_supported():
    global _BUFFERED1
    if _BUFFERED1 is not None:
        return _BUFFERED1
    try:
        def _copy(x_ref, o_ref):
            o_ref[...] = x_ref[...]
        probe = pl.pallas_call(
            _copy,
            out_shape=jax.ShapeDtypeStruct((16, 128), jnp.float32),
            grid=(2,),
            in_specs=[pl.BlockSpec((8, 128), lambda i: (0, 0),
                                   pipeline_mode=pl.Buffered(1))],
            out_specs=pl.BlockSpec((8, 128), lambda i: (i, 0)),
        )(jnp.zeros((8, 128), jnp.float32))
        jax.block_until_ready(probe)
        _BUFFERED1 = True
    except Exception:
        _BUFFERED1 = False
    return _BUFFERED1


def _w_spec(shape, grid_rank, single_buffer=True):
    """Constant-index BlockSpec for weights (single-buffered when supported)."""
    nd = len(shape)
    if grid_rank == 2:
        idx = lambda b, i, _nd=nd: (0,) * _nd
    else:
        idx = lambda b, i, j, _nd=nd: (0,) * _nd
    if single_buffer and _buffered1_supported():
        return pl.BlockSpec(shape, idx, pipeline_mode=pl.Buffered(1))
    return pl.BlockSpec(shape, idx)


def _pick_vmem_limit():
    # ~75% of physical VMEM: ≈48 MiB on v7x (64 MiB), ≈96 MiB on v5e/v6e (128 MiB).
    try:
        info = pltpu.get_tpu_info()
        cap = int(getattr(info, "vmem_capacity_bytes", 128 * 1024 * 1024))
    except Exception:
        cap = 128 * 1024 * 1024
    return min(cap * 3 // 4, 100 * 1024 * 1024)


def _pick_block(total, target):
    t = min(total, target)
    for d in range(t, 0, -1):
        if total % d == 0 and (d % 8 == 0 or d == total):
            return d
    return total


# ---------------------------------------------------------------------------
# Kernel 1: ln1 + fused QKV projection (per (batch, seq-tile) grid step).
# ---------------------------------------------------------------------------
def qkv_kernel(x_ref, g1_ref, b1_ref, w_qkv_ref, b_qkv_ref, qkv_ref):
    x = x_ref[0]                                             # (ts, E) f32
    y = _layernorm(x, g1_ref[...], b1_ref[...])
    qkv = jnp.dot(y.astype(jnp.bfloat16), w_qkv_ref[...],    # bf16 MXU, f32 acc
                  preferred_element_type=jnp.float32) + b_qkv_ref[...]
    qkv_ref[0] = qkv.astype(jnp.bfloat16)                    # (ts, 3E) bf16


# ---------------------------------------------------------------------------
# Kernel 2: flash attention over KV chunks + single-matmul output projection
#           + residual + ln2 + tanh-GELU FFN (+ optional fused final LN).
# Grid: (batch, q_tiles, kv_chunks);  kv axis is "arbitrary" (online softmax).
# ---------------------------------------------------------------------------
def _make_attn_ffn_kernel(n_head, with_final_ln):
    def kernel(*refs):
        if with_final_ln:
            (x_ref, q_ref, k_ref, v_ref,
             w_proj_ref, b_proj_ref, g2_ref, b2_ref,
             w_fc_ref, b_fc_ref, w_p2_ref, b_p2_ref,
             gf_ref, bf_ref,
             out_ref, m_sc, l_sc, acc_sc) = refs
            final_ln = (gf_ref, bf_ref)
        else:
            (x_ref, q_ref, k_ref, v_ref,
             w_proj_ref, b_proj_ref, g2_ref, b2_ref,
             w_fc_ref, b_fc_ref, w_p2_ref, b_p2_ref,
             out_ref, m_sc, l_sc, acc_sc) = refs
            final_ln = None

        H = n_head
        ts, E = q_ref.shape[1], q_ref.shape[2]
        hd = E // H
        kv = pl.program_id(2)

        @pl.when(kv == 0)
        def _():
            m_sc[...] = jnp.full_like(m_sc, -jnp.inf)
            l_sc[...] = jnp.zeros_like(l_sc)
            acc_sc[...] = jnp.zeros_like(acc_sc)

        # In-kernel head split of the lane-dense (ts,E)/(bkv,E) bf16 tiles.
        q2, k2, v2 = q_ref[0], k_ref[0], v_ref[0]
        q = jnp.stack([q2[:, h * hd:(h + 1) * hd] for h in range(H)])  # (H,ts,hd)
        k = jnp.stack([k2[:, h * hd:(h + 1) * hd] for h in range(H)])  # (H,kt,hd)
        v = jnp.stack([v2[:, h * hd:(h + 1) * hd] for h in range(H)])

        scale = 1.0 / math.sqrt(hd)
        s = jnp.einsum('hqd,hkd->hqk', q, k,
                       preferred_element_type=jnp.float32) * scale      # (H,ts,kt)
        m_prev = m_sc[...]
        m_new = jnp.maximum(m_prev, jnp.max(s, axis=-1, keepdims=True))
        alpha = jnp.exp(m_prev - m_new)
        p = jnp.exp(s - m_new)
        l_sc[...] = alpha * l_sc[...] + jnp.sum(p, axis=-1, keepdims=True)
        acc_sc[...] = alpha * acc_sc[...] + jnp.einsum(
            'hqk,hkd->hqd', p.astype(jnp.bfloat16), v,
            preferred_element_type=jnp.float32)                         # (H,ts,hd)
        m_sc[...] = m_new

        @pl.when(kv == pl.num_programs(2) - 1)
        def _():
            x = x_ref[0]                                     # (ts, E) f32 residual
            o = acc_sc[...] * pl.reciprocal(l_sc[...], approx=True)
            # concat heads -> (ts, E): one full-depth (ts,E)@(E,E) projection.
            y_attn = jnp.concatenate([o[h] for h in range(H)], axis=-1)
            x1 = x + jnp.dot(y_attn.astype(jnp.bfloat16), w_proj_ref[...],
                             preferred_element_type=jnp.float32) + b_proj_ref[...]
            y2 = _layernorm(x1, g2_ref[...], b2_ref[...])
            h1 = jnp.dot(y2.astype(jnp.bfloat16), w_fc_ref[...],
                         preferred_element_type=jnp.float32) + b_fc_ref[...]
            # tanh-GELU in f32 (v5e has no bf16 EUP; flip to bf16 on v6e/v7x if
            # the accuracy budget allows).
            c = math.sqrt(2.0 / math.pi)
            h1 = 0.5 * h1 * (1.0 + jnp.tanh(c * (h1 + 0.044715 * h1 * h1 * h1)))
            x2 = x1 + jnp.dot(h1.astype(jnp.bfloat16), w_p2_ref[...],
                              preferred_element_type=jnp.float32) + b_p2_ref[...]
            if final_ln is not None:                         # fused final LN
                x2 = _layernorm(x2, final_ln[0][...], final_ln[1][...])
            out_ref[0] = x2
    return kernel


# ---------------------------------------------------------------------------
# Standalone final LayerNorm kernel (only used when there are no blocks).
# ---------------------------------------------------------------------------
def ln_kernel(x_ref, g_ref, b_ref, out_ref):
    out_ref[0] = _layernorm(x_ref[0], g_ref[...], b_ref[...])


def layernorm_forward(x, gamma, beta, *, block_s=None, vmem_limit_bytes=None):
    B, S, E = x.shape
    ts = block_s if block_s is not None else _pick_block(S, 512)
    assert S % ts == 0
    vmem = vmem_limit_bytes if vmem_limit_bytes is not None else _pick_vmem_limit()
    return pl.pallas_call(
        ln_kernel,
        out_shape=jax.ShapeDtypeStruct((B, S, E), jnp.float32),
        grid_spec=pltpu.PrefetchScalarGridSpec(
            num_scalar_prefetch=0, grid=(B, S // ts),
            in_specs=[pl.BlockSpec((1, ts, E), lambda b, i: (b, i, 0)),
                      _w_spec((1, E), 2), _w_spec((1, E), 2)],
            out_specs=pl.BlockSpec((1, ts, E), lambda b, i: (b, i, 0)),
        ),
        compiler_params=pltpu.CompilerParams(
            dimension_semantics=("parallel", "parallel"),
            vmem_limit_bytes=vmem),
    )(x, gamma, beta)


# ---------------------------------------------------------------------------
# One transformer Block.
# ---------------------------------------------------------------------------
def block_forward(x, p, *, block_q=None, block_kv=None, final_ln=None,
                  vmem_limit_bytes=None):
    B, S, E = x.shape
    H = int(p["n_head"])
    assert E % H == 0
    hd = E // H
    bq = block_q if block_q is not None else _pick_block(S, 256)
    bkv = block_kv if block_kv is not None else _pick_block(S, 512)
    assert S % bq == 0 and S % bkv == 0
    nt, nkv = S // bq, S // bkv
    vmem = vmem_limit_bytes if vmem_limit_bytes is not None else _pick_vmem_limit()

    cparams2 = pltpu.CompilerParams(
        dimension_semantics=("parallel", "parallel"), vmem_limit_bytes=vmem)
    cparams3 = pltpu.CompilerParams(
        dimension_semantics=("parallel", "parallel", "arbitrary"),
        vmem_limit_bytes=vmem)

    # ---- kernel 1: ln1 + fused QKV -> (B, S, 3E) bf16 ----
    qkv = pl.pallas_call(
        qkv_kernel,
        out_shape=jax.ShapeDtypeStruct((B, S, 3 * E), jnp.bfloat16),
        grid_spec=pltpu.PrefetchScalarGridSpec(
            num_scalar_prefetch=0, grid=(B, nt),
            in_specs=[
                pl.BlockSpec((1, bq, E), lambda b, i: (b, i, 0)),      # x tile
                _w_spec((1, E), 2), _w_spec((1, E), 2),                # ln1 g/b
                _w_spec((E, 3 * E), 2), _w_spec((1, 3 * E), 2),        # c_attn
            ],
            out_specs=pl.BlockSpec((1, bq, 3 * E), lambda b, i: (b, i, 0)),
        ),
        compiler_params=cparams2,
        cost_estimate=pl.CostEstimate(
            flops=6 * B * S * E * E, transcendentals=0,
            bytes_accessed=B * S * E * 4 + B * 3 * E * E * 2 + 3 * B * S * E * 2),
    )(x, p["ln1_g"], p["ln1_b"], p["w_qkv"], p["b_qkv"])

    # ---- kernel 2: flash attention + proj + ln2 + FFN (+ fused final LN) ----
    kern = _make_attn_ffn_kernel(H, final_ln is not None)
    in_specs = [
        pl.BlockSpec((1, bq, E), lambda b, i, j: (b, i, 0)),       # residual x
        pl.BlockSpec((1, bq, E), lambda b, i, j: (b, i, 0)),       # Q cols of qkv
        pl.BlockSpec((1, bkv, E), lambda b, i, j: (b, j, 1)),      # K chunk cols
        pl.BlockSpec((1, bkv, E), lambda b, i, j: (b, j, 2)),      # V chunk cols
        _w_spec((E, E), 3), _w_spec((1, E), 3),                    # attn proj
        _w_spec((1, E), 3), _w_spec((1, E), 3),                    # ln2 g/b
        _w_spec((E, 4 * E), 3), _w_spec((1, 4 * E), 3),            # c_fc
        _w_spec((4 * E, E), 3), _w_spec((1, E), 3),                # ffn proj
    ]
    args = [x, qkv, qkv, qkv,
            p["w_proj"], p["b_proj"], p["ln2_g"], p["ln2_b"],
            p["w_fc"], p["b_fc"], p["w_p2"], p["b_p2"]]
    if final_ln is not None:
        in_specs += [_w_spec((1, E), 3), _w_spec((1, E), 3)]       # fused final LN
        args += [final_ln[0], final_ln[1]]

    flops = 4 * B * S * S * E + 18 * B * S * E * E
    trans = B * H * S * S + 4 * B * S * E
    bytes_acc = (2 * B * S * E * 4 + (1 + 2 * nt) * B * S * E * 2
                 + B * 9 * E * E * 2)

    out = pl.pallas_call(
        kern,
        out_shape=jax.ShapeDtypeStruct((B, S, E), jnp.float32),
        grid_spec=pltpu.PrefetchScalarGridSpec(
            num_scalar_prefetch=0, grid=(B, nt, nkv),
            in_specs=in_specs,
            out_specs=pl.BlockSpec((1, bq, E), lambda b, i, j: (b, i, 0)),
            scratch_shapes=[
                pltpu.VMEM((H, bq, 1), jnp.float32),    # running max m
                pltpu.VMEM((H, bq, 1), jnp.float32),    # running sum l
                pltpu.VMEM((H, bq, hd), jnp.float32),   # running acc
            ],
        ),
        compiler_params=cparams3,
        cost_estimate=pl.CostEstimate(flops=flops, transcendentals=trans,
                                      bytes_accessed=bytes_acc),
    )(*args)
    return out
    # TODO(synk): a further fusion would compute next layer's ln1+QKV in this
    # kernel's epilogue (dropping qkv_kernel for all but the first layer).


def gpt_forward(idx, params, *, block_q=None, block_kv=None):
    wte = params["wte"]
    B, S = idx.shape
    E = wte.shape[1]
    # TODO(synk): embedding row gather (wte[idx]) stays in plain JAX; a Pallas
    # version would need scalar-prefetch indexed row DMA (pl.Element gather).
    x = jnp.take(wte, idx, axis=0) + 1.0         # tok_emb + ones positional emb
    layers = params["layers"]
    n = len(layers)
    if n == 0:
        x = layernorm_forward(x, params["lnf_g"], params["lnf_b"])
    else:
        for li, p in enumerate(layers):
            fin = (params["lnf_g"], params["lnf_b"]) if li == n - 1 else None
            x = block_forward(x, p, block_q=block_q, block_kv=block_kv,
                              final_ln=fin)
    return x.reshape(B * S, E)                   # module's final view(-1, n_embd)


# ---------------------------------------------------------------------------
# Pure-JAX f32 reference reproducing the PyTorch GPT.forward semantics.
# ---------------------------------------------------------------------------
def _block_reference(x, p):
    B, S, E = x.shape
    H = int(p["n_head"])
    hd = E // H
    f32 = lambda a: a.astype(jnp.float32)
    y = _layernorm(x, p["ln1_g"], p["ln1_b"])
    qkv = y @ f32(p["w_qkv"]) + p["b_qkv"]
    q, k, v = jnp.split(qkv, 3, axis=-1)
    q = q.reshape(B, S, H, hd).transpose(0, 2, 1, 3)
    k = k.reshape(B, S, H, hd).transpose(0, 2, 1, 3)
    v = v.reshape(B, S, H, hd).transpose(0, 2, 1, 3)
    att = (q @ jnp.swapaxes(k, -2, -1)) / math.sqrt(hd)
    att = jax.nn.softmax(att, axis=-1)
    ya = (att @ v).transpose(0, 2, 1, 3).reshape(B, S, E)
    x1 = x + ya @ f32(p["w_proj"]) + p["b_proj"]
    y2 = _layernorm(x1, p["ln2_g"], p["ln2_b"])
    h = y2 @ f32(p["w_fc"]) + p["b_fc"]
    c = math.sqrt(2.0 / math.pi)
    h = 0.5 * h * (1.0 + jnp.tanh(c * (h + 0.044715 * h ** 3)))
    return x1 + h @ f32(p["w_p2"]) + p["b_p2"]


def gpt_reference(idx, params):
    wte = params["wte"]
    B, S = idx.shape
    E = wte.shape[1]
    x = wte[idx] + 1.0
    for p in params["layers"]:
        x = _block_reference(x, p)
    x = _layernorm(x, params["lnf_g"], params["lnf_b"])
    return x.reshape(B * S, E)


# ---------------------------------------------------------------------------
def init_layer_params(key, E, H):
    ks = jax.random.split(key, 6)
    std = 0.02
    bf16 = jnp.bfloat16
    return dict(
        n_head=H,
        ln1_g=jnp.ones((1, E), jnp.float32),
        ln1_b=jnp.zeros((1, E), jnp.float32),
        w_qkv=(std * jax.random.normal(ks[0], (E, 3 * E), jnp.float32)).astype(bf16),
        b_qkv=0.01 * jax.random.normal(ks[1], (1, 3 * E), jnp.float32),
        w_proj=(std * jax.random.normal(ks[2], (E, E), jnp.float32)).astype(bf16),
        b_proj=jnp.zeros((1, E), jnp.float32),
        ln2_g=jnp.ones((1, E), jnp.float32),
        ln2_b=jnp.zeros((1, E), jnp.float32),
        w_fc=(std * jax.random.normal(ks[3], (E, 4 * E), jnp.float32)).astype(bf16),
        b_fc=0.01 * jax.random.normal(ks[4], (1, 4 * E), jnp.float32),
        w_p2=(std * jax.random.normal(ks[5], (4 * E, E), jnp.float32)).astype(bf16),
        b_p2=jnp.zeros((1, E), jnp.float32),
    )


if __name__ == "__main__":
    # small config: vocab=512, n_embd=128 (lane-dense), n_head=4, n_layer=2
    vocab_size, n_embd, n_head, n_layer = 512, 128, 4, 2
    batch, seq = 2, 128
    block_q, block_kv = 64, 64   # grid (2, 2, 2): exercises q-tiling + KV chunks

    key = jax.random.PRNGKey(0)
    keys = jax.random.split(key, 2 + n_layer)
    wte = 0.5 * jax.random.normal(keys[0], (vocab_size, n_embd), jnp.float32)
    idx = jax.random.randint(keys[1], (batch, seq), 0, vocab_size)

    params = dict(
        wte=wte,
        lnf_g=jnp.ones((1, n_embd), jnp.float32),
        lnf_b=jnp.zeros((1, n_embd), jnp.float32),
        layers=[init_layer_params(k, n_embd, n_head) for k in keys[2:]],
    )

    out = gpt_forward(idx, params, block_q=block_q, block_kv=block_kv)
    out = jax.block_until_ready(out)

    ref = gpt_reference(idx, params)
    assert out.shape == (batch * seq, n_embd)
    max_err = float(jnp.max(jnp.abs(out - ref)))
    assert jnp.allclose(out, ref, atol=2e-2, rtol=2e-2), (
        f"mismatch vs reference, max abs err {max_err:.3e}")
    print("KERNEL_OK")
</pallas_src>

<mosaic_0001>
module attributes {stable_mosaic.version = 11 : i64} {
  func.func @_copy(%arg0: i32, %arg1: memref<8x128xf32, #tpu.memory_space<vmem>>, %arg2: memref<8x128xf32, #tpu.memory_space<vmem>>) attributes {dimension_semantics = [#tpu.dimension_semantics<arbitrary>], iteration_bounds = array<i64: 2>, scalar_prefetch = 0 : i64, scratch_operands = 0 : i64, tpu.core_type = #tpu.core_type<tc>, window_params = [{pipeline_mode = #tpu.pipeline_mode<synchronous>, transform_indices = @transform_0, window_bounds = array<i64: 8, 128>}, {transform_indices = @transform_1, window_bounds = array<i64: 8, 128>}]} {
    %c0 = arith.constant 0 : index
    %c0_0 = arith.constant 0 : index
    %0 = vector.load %arg1[%c0, %c0_0] : memref<8x128xf32, #tpu.memory_space<vmem>>, vector<8x128xf32>
    %c0_1 = arith.constant 0 : index
    %c0_2 = arith.constant 0 : index
    %1 = vector.load %arg2[%c0_1, %c0_2] : memref<8x128xf32, #tpu.memory_space<vmem>>, vector<8x128xf32>
    tpu.vector_store %arg2[%c0_1, %c0_2], %0 {strides = array<i32>} : memref<8x128xf32, #tpu.memory_space<vmem>>, vector<8x128xf32>,
    return
  }
  func.func @transform_0(%arg0: i32) -> (i32, i32) {
    %c0_i32 = arith.constant 0 : i32
    %c0_i32_0 = arith.constant 0 : i32
    %c0_i32_1 = arith.constant 0 : i32
    return %c0_i32, %c0_i32_0 : i32, i32
  }
  func.func @transform_1(%arg0: i32) -> (i32, i32) {
    %c0_i32 = arith.constant 0 : i32
    %c0_i32_0 = arith.constant 0 : i32
    return %arg0, %c0_i32 : i32, i32
  }
}

module attributes {stable_mosaic.version = 11 : i64} {
  func.func @qkv_kernel(%arg0: i32, %arg1: i32, %arg2: memref<1x64x128xf32, #tpu.memory_space<vmem>>, %arg3: memref<1x128xf32, #tpu.memory_space<vmem>>, %arg4: memref<1x128xf32, #tpu.memory_space<vmem>>, %arg5: memref<128x384xbf16, #tpu.memory_space<vmem>>, %arg6: memref<1x384xf32, #tpu.memory_space<vmem>>, %arg7: memref<1x64x384xbf16, #tpu.memory_space<vmem>>) attributes {dimension_semantics = [#tpu.dimension_semantics<parallel>, #tpu.dimension_semantics<parallel>], iteration_bounds = array<i64: 2, 2>, scalar_prefetch = 0 : i64, scratch_operands = 0 : i64, tpu.core_type = #tpu.core_type<tc>, window_params = [{transform_indices = @transform_0, window_bounds = array<i64: 1, 64, 128>}, {pipeline_mode = #tpu.pipeline_mode<synchronous>, transform_indices = @transform_1, window_bounds = array<i64: 1, 128>}, {pipeline_mode = #tpu.pipeline_mode<synchronous>, transform_indices = @transform_2, window_bounds = array<i64: 1, 128>}, {pipeline_mode = #tpu.pipeline_mode<synchronous>, transform_indices = @transform_3, window_bounds = array<i64: 128, 384>}, {pipeline_mode = #tpu.pipeline_mode<synchronous>, transform_indices = @transform_4, window_bounds = array<i64: 1, 384>}, {transform_indices = @transform_5, window_bounds = array<i64: 1, 64, 384>}]} {
    %c0 = arith.constant 0 : index
    %c0_0 = arith.constant 0 : index
    %c0_1 = arith.constant 0 : index
    %0 = vector.load %arg2[%c0, %c0_0, %c0_1] : memref<1x64x128xf32, #tpu.memory_space<vmem>>, vector<1x64x128xf32>
    %1 = vector.shape_cast %0 : vector<1x64x128xf32> to vector<64x128xf32>
    %c0_2 = arith.constant 0 : index
    %c0_3 = arith.constant 0 : index
    %2 = vector.load %arg3[%c0_2, %c0_3] : memref<1x128xf32, #tpu.memory_space<vmem>>, vector<1x128xf32>
    %c0_4 = arith.constant 0 : index
    %c0_5 = arith.constant 0 : index
    %3 = vector.load %arg4[%c0_4, %c0_5] : memref<1x128xf32, #tpu.memory_space<vmem>>, vector<1x128xf32>
    %cst = arith.constant dense<0.000000e+00> : vector<64xf32>
    %4 = vector.multi_reduction <add>, %1, %cst [1] : vector<64x128xf32> to vector<64xf32>
    %5 = vector.shape_cast %4 : vector<64xf32> to vector<64x1xf32>
    %cst_6 = arith.constant 1.280000e+02 : f32
    %6 = vector.broadcast %cst_6 : f32 to vector<64x1xf32>
    %7 = arith.divf %5, %6 : vector<64x1xf32>
    %8 = vector.broadcast %7 : vector<64x1xf32> to vector<64x128xf32>
    %9 = arith.subf %1, %8 : vector<64x128xf32>
    %10 = arith.mulf %9, %9 : vector<64x128xf32>
    %cst_7 = arith.constant dense<0.000000e+00> : vector<64xf32>
    %11 = vector.multi_reduction <add>, %10, %cst_7 [1] : vector<64x128xf32> to vector<64xf32>
    %12 = vector.shape_cast %11 : vector<64xf32> to vector<64x1xf32>
    %cst_8 = arith.constant 1.280000e+02 : f32
    %13 = vector.broadcast %cst_8 : f32 to vector<64x1xf32>
    %14 = arith.divf %12, %13 : vector<64x1xf32>
    %15 = vector.broadcast %7 : vector<64x1xf32> to vector<64x128xf32>
    %16 = arith.subf %1, %15 : vector<64x128xf32>
    %cst_9 = arith.constant 9.99999974E-6 : f32
    %17 = vector.broadcast %cst_9 : f32 to vector<64x1xf32>
    %18 = arith.addf %14, %17 : vector<64x1xf32>
    %19 = math.rsqrt %18 : vector<64x1xf32>
    %20 = vector.broadcast %19 : vector<64x1xf32> to vector<64x128xf32>
    %21 = arith.mulf %16, %20 : vector<64x128xf32>
    %22 = vector.broadcast %2 : vector<1x128xf32> to vector<64x128xf32>
    %23 = arith.mulf %21, %22 : vector<64x128xf32>
    %24 = vector.broadcast %3 : vector<1x128xf32> to vector<64x128xf32>
    %25 = arith.addf %23, %24 : vector<64x128xf32>
    %26 = arith.truncf %25 : vector<64x128xf32> to vector<64x128xbf16>
    %c0_10 = arith.constant 0 : index
    %c0_11 = arith.constant 0 : index
    %27 = vector.load %arg5[%c0_10, %c0_11] : memref<128x384xbf16, #tpu.memory_space<vmem>>, vector<128x384xbf16>
    %cst_12 = arith.constant dense<0.000000e+00> : vector<64x384xf32>
    %28 = tpu.matmul %26, %27, %cst_12 {dimension_numbers = #tpu.dot_dimension_numbers<[1], [0], [0], [1], [0, 0, 1, 1], [], []>} : vector<64x128xbf16>, vector<128x384xbf16>, vector<64x384xf32> -> vector<64x384xf32>
    %c0_13 = arith.constant 0 : index
    %c0_14 = arith.constant 0 : index
    %29 = vector.load %arg6[%c0_13, %c0_14] : memref<1x384xf32, #tpu.memory_space<vmem>>, vector<1x384xf32>
    %30 = vector.broadcast %29 : vector<1x384xf32> to vector<64x384xf32>
    %31 = arith.addf %28, %30 : vector<64x384xf32>
    %32 = arith.truncf %31 : vector<64x384xf32> to vector<64x384xbf16>
    %c0_15 = arith.constant 0 : index
    %c0_16 = arith.constant 0 : index
    %c0_17 = arith.constant 0 : index
    %33 = vector.load %arg7[%c0_15, %c0_16, %c0_17] : memref<1x64x384xbf16, #tpu.memory_space<vmem>>, vector<1x64x384xbf16>
    %34 = vector.shape_cast %33 : vector<1x64x384xbf16> to vector<64x384xbf16>
    %35 = vector.shape_cast %32 : vector<64x384xbf16> to vector<1x64x384xbf16>
    tpu.vector_store %arg7[%c0_15, %c0_16, %c0_17], %35 {strides = array<i32>} : memref<1x64x384xbf16, #tpu.memory_space<vmem>>, vector<1x64x384xbf16>,
    return
  }
  func.func @transform_0(%arg0: i32, %arg1: i32) -> (i32, i32, i32) {
    %c0_i32 = arith.constant 0 : i32
    %c0_i32_0 = arith.constant 0 : i32
    return %arg0, %arg1, %c0_i32 : i32, i32, i32
  }
  func.func @transform_1(%arg0: i32, %arg1: i32) -> (i32, i32) {
    %c0_i32 = arith.constant 0 : i32
    %c0_i32_0 = arith.constant 0 : i32
    %c0_i32_1 = arith.constant 0 : i32
    return %c0_i32, %c0_i32_0 : i32, i32
  }
  func.func @transform_2(%arg0: i32, %arg1: i32) -> (i32, i32) {
    %c0_i32 = arith.constant 0 : i32
    %c0_i32_0 = arith.constant 0 : i32
    %c0_i32_1 = arith.constant 0 : i32
    return %c0_i32, %c0_i32_0 : i32, i32
  }
  func.func @transform_3(%arg0: i32, %arg1: i32) -> (i32, i32) {
    %c0_i32 = arith.constant 0 : i32
    %c0_i32_0 = arith.constant 0 : i32
    %c0_i32_1 = arith.constant 0 : i32
    return %c0_i32, %c0_i32_0 : i32, i32
  }
  func.func @transform_4(%arg0: i32, %arg1: i32) -> (i32, i32) {
    %c0_i32 = arith.constant 0 : i32
    %c0_i32_0 = arith.constant 0 : i32
    %c0_i32_1 = arith.constant 0 : i32
    return %c0_i32, %c0_i32_0 : i32, i32
  }
  func.func @transform_5(%arg0: i32, %arg1: i32) -> (i32, i32, i32) {
    %c0_i32 = arith.constant 0 : i32
    %c0_i32_0 = arith.constant 0 : i32
    return %arg0, %arg1, %c0_i32 : i32, i32, i32
  }
}

</mosaic_0001>

<llo_original>
// kernel: tpu_custom_call.1
$region0: #{tpu_custom_call.1}
  #allocation0 [shape = 'u32[]', space=smem, size = 0x4, offset = 0x4, fixed_abs, tag = 'smem constant byte address 0x4 - core index']
  #allocation1 [shape = 'u32[144,128]{1,0:T(1,128)}', space=vmem, size = 0x12000, scoped, tag = 'internal scratch']
  %s0 = inlined_call_operand.hbm [shape: f32[8,128], index: 0, kind: input, shape index: {}]
  %s1 = inlined_call_operand.hbm [shape: f32[16,128], index: 1, kind: output, shape index: {}]
  %s2 = sld [smem:[#allocation0]]
  $region41: #{tpu_custom_call.1} parent=0
    _
  %s4 = ssub.s32 1, %s2
  %s5 = scalar_select 0, %s4, %s2
  $region1: #{tpu_custom_call.1} parent=0
    #allocation2 [shape = 'u8[4096]{0}', space=vmem, size = 0x1000, scoped, tag = 'input window, operand 0, single buffered']
    #allocation3 [shape = 's32[2]{0}', space=sflag, size = 0x8, scoped, tag = 'scoped memory for tpu_custom_call.1']
    #allocation4 [shape = 's32[2]{0}', space=sflag, size = 0x8, scoped, tag = 'scoped memory for tpu_custom_call.1']
    #allocation5 [shape = 'u8[8192]{0}', space=vmem, size = 0x2000, scoped, tag = 'output window, operand 0']
    %6 = vsyncpa [#allocation3], 0
    %7 = vsyncpa [#allocation4], 0
    %s8 = scalar_lea.sflag [#allocation4], 1
    %9 = vsyncpa %s8, 0
    loop: start=0, step=1, limit=4
    $region2: #{tpu_custom_call.1} parent=1 // loop_pre_header
      _
    $region3: #{tpu_custom_call.1} parent=1 // loop_header
      %s11 = sphi 0, %s15
      %p12 = scmp.ge.s32.totalorder %s11, 4
      %s19 = sphi 0, %s19
      %s21 = sphi 0, %s19
      %s22 = sphi 0, %s21
      %s36 = sphi 0, %s22
      %s42 = sphi 0, %s44
      %s45 = sphi 0, %s42
      %s46 = sphi 0, %s45
      %s62 = sphi 0, %s46
    $region4: #{tpu_custom_call.1} parent=1 // loop_header_branch
      %14 = sbr.rel (%p12) target = $region8
    $region5: #{tpu_custom_call.1} parent=1 // loop_body
      %s16 = ssub.s32 %s11, 1
      %s17 = ssub.s32 %s11, 2
      %s18 = sadd.s32 %s11, 1
      %s20 = sadd.s32 %s19, 1
      %p23 = scmp.eq.s32.totalorder %s11, 1
      %p24 = scmp.ne.s32.totalorder %s19, %s21
      %p25 = scmp.eq.s32.totalorder %s11, 0
      %p26 = por %p24, %p25
      %p27 = scmp.ne.s32.totalorder %s19, %s21
      %p28 = scmp.eq.s32.totalorder %s16, 1
      %p29 = por %p27, %p28
      %p30 = scmp.ne.s32.totalorder %s21, %s22
      %p31 = scmp.eq.s32.totalorder %s16, 0
      %p32 = por %p30, %p31
      %p33 = scmp.ne.s32.totalorder %s21, %s22
      %p34 = scmp.eq.s32.totalorder %s17, 1
      %p35 = por %p33, %p34
      %p37 = scmp.ne.s32.totalorder %s22, %s36
      %p38 = scmp.eq.s32.totalorder %s17, 0
      %p39 = por %p37, %p38
      %s40 = ssub.s32 %s11, %s18
      %p41 = scmp.eq.s32.totalorder %s40, 0
      %s43 = sadd.s32 %s42, 1
      %s44 = scalar_select %p41, %s42, %s43
      %p47 = pneg %p41
      %p48 = scmp.eq.s32.totalorder %s11, 1
      %p49 = por %p47, %p48
      %p50 = scmp.ne.s32.totalorder %s42, %s45
      %p51 = scmp.eq.s32.totalorder %s11, 0
      %p52 = por %p50, %p51
      %p53 = scmp.ne.s32.totalorder %s42, %s45
      %p54 = scmp.eq.s32.totalorder %s16, 1
      %p55 = por %p53, %p54
      %p56 = scmp.ne.s32.totalorder %s45, %s46
      %p57 = scmp.eq.s32.totalorder %s16, 0
      %p58 = por %p56, %p57
      %p59 = scmp.ne.s32.totalorder %s45, %s46
      %p60 = scmp.eq.s32.totalorder %s17, 1
      %p61 = por %p59, %p60
      %p63 = scmp.ne.s32.totalorder %s46, %s62
      %p64 = scmp.eq.s32.totalorder %s17, 0
      %p65 = por %p63, %p64
      %p66 = scmp.le.s32.totalorder 1, %s11
      %p67 = scmp.lt.s32.totalorder %s11, 3
      %p68 = pnand %p66, %p67
      %p69 = pneg %p68
      // Predicated region
      $region9: #{tpu_custom_call.1} parent=5 // pred_check
        _
      $region10: #{tpu_custom_call.1} parent=5 // pred_check_branch
        %71 = sbr.rel (%p68) target = $region12
      $region11: #{tpu_custom_call.1} parent=5 // pred_region
        %s72 = ssub.s32 %s11, 1
        // Predicated region
        $region13: #{tpu_custom_call.1} parent=11 // pred_check
          %p73 = pneg %p32
        $region14: #{tpu_custom_call.1} parent=11 // pred_check_branch
          %75 = sbr.rel (%p73) target = $region16
        $region15: #{tpu_custom_call.1} parent=11 // pred_region
          %s77 = ssub.s32 128, 128
          %78 = vsyncadd [#allocation3], %s77
          %s80 = sshll.u32 [#allocation2], 4
          %s81 = int_to_ptr.vmem [resolvable:$true] %s80
          %83 = dma.hbm_to_vmem [thread:$0]  %s0, 128, %s81, [#allocation3]
        $region16: #{tpu_custom_call.1} parent=11 // pred_fallthru
          _
      $region12: #{tpu_custom_call.1} parent=5 // pred_fallthru
        _
      %p84 = scmp.lt.s32.totalorder %s11, 2
      // Predicated region
      $region17: #{tpu_custom_call.1} parent=5 // pred_check
        %p85 = pneg %p84
      $region18: #{tpu_custom_call.1} parent=5 // pred_check_branch
        %87 = sbr.rel (%p85) target = $region20
      $region19: #{tpu_custom_call.1} parent=5 // pred_region
        _
      $region20: #{tpu_custom_call.1} parent=5 // pred_fallthru
        _
      %p88 = scmp.le.s32.totalorder 1, %s11
      %p89 = scmp.lt.s32.totalorder %s11, 3
      %p90 = pnand %p88, %p89
      %p91 = pneg %p90
      // Predicated region
      $region21: #{tpu_custom_call.1} parent=5 // pred_check
        _
      $region22: #{tpu_custom_call.1} parent=5 // pred_check_branch
        %93 = sbr.rel (%p90) target = $region24
      $region23: #{tpu_custom_call.1} parent=5 // pred_region
        %s94 = ssub.s32 %s11, 1
        // Predicated region
        $region25: #{tpu_custom_call.1} parent=23 // pred_check
          %p95 = pneg %p32
        $region26: #{tpu_custom_call.1} parent=23 // pred_check_branch
          %97 = sbr.rel (%p95) target = $region28
        $region27: #{tpu_custom_call.1} parent=23 // pred_region
          %98 = dma.done [#allocation3], 128
        $region28: #{tpu_custom_call.1} parent=23 // pred_fallthru
          _
        %p99 = pneg %p32
        %p100 = pneg %p29
        %p101 = pneg %p58
        %p102 = pneg %p55
        %s103 = sand.u32 %s45, 1
        %s104 = scalar_lea.sflag [#allocation4], %s103
        %s105 = sand.u32 %s45, 1
        %s106 = smul.addr %s105, 8
        %s107 = scalar_lea.vmem [#allocation5], %s106
        %v108 = vld [vmem:[#allocation2] sm:$0xff]
        %109 = vst [vmem:[%s107] sm:$0xff] %v108
        %s110 = sand.u32 %s45, 1
        %s111 = scalar_lea.sflag [#allocation4], %s110
        %s112 = sand.u32 %s45, 1
        %s113 = smul.addr %s112, 8
        %s114 = scalar_lea.vmem [#allocation5], %s113
        // Predicated region
        $region29: #{tpu_custom_call.1} parent=23 // pred_check
          %p115 = pneg %p55
        $region30: #{tpu_custom_call.1} parent=23 // pred_check_branch
          %117 = sbr.rel (%p115) target = $region32
        $region31: #{tpu_custom_call.1} parent=23 // pred_region
          %s119 = ssub.s32 128, 128
          %120 = vsyncadd %s111, %s119
          %s121 = smul.addr %s16, 128
          %s122 = scalar_lea.hbm %s1, %s121
          %s124 = sshll.u32 %s114, 4
          %s125 = int_to_ptr.vmem [resolvable:$true] %s124
          %127 = dma.vmem_to_hbm [thread:$0]  %s125, 128, %s122, %s111
        $region32: #{tpu_custom_call.1} parent=23 // pred_fallthru
          _
      $region24: #{tpu_custom_call.1} parent=5 // pred_fallthru
        _
      %p128 = scmp.le.s32.totalorder 2, %s11
      // Predicated region
      $region33: #{tpu_custom_call.1} parent=5 // pred_check
        %p129 = pneg %p128
      $region34: #{tpu_custom_call.1} parent=5 // pred_check_branch
        %131 = sbr.rel (%p129) target = $region36
      $region35: #{tpu_custom_call.1} parent=5 // pred_region
        %s132 = ssub.s32 %s11, 2
        // Predicated region
        $region37: #{tpu_custom_call.1} parent=35 // pred_check
          %p133 = pneg %p61
        $region38: #{tpu_custom_call.1} parent=35 // pred_check_branch
          %135 = sbr.rel (%p133) target = $region40
        $region39: #{tpu_custom_call.1} parent=35 // pred_region
          %s136 = sand.u32 %s46, 1
          %s137 = scalar_lea.sflag [#allocation4], %s136
          %s138 = sand.u32 %s46, 1
          %s139 = smul.addr %s138, 8
          %s140 = scalar_lea.vmem [#allocation5], %s139
          %141 = dma.done %s137, 128
        $region40: #{tpu_custom_call.1} parent=35 // pred_fallthru
          _
      $region36: #{tpu_custom_call.1} parent=5 // pred_fallthru
        _
    $region6: #{tpu_custom_call.1} parent=1 // loop_footer
      %s15 = sadd.s32 1, %s11
    $region7: #{tpu_custom_call.1} parent=1 // loop_footer_branch
      %10 = sbr.rel target = $region3
    $region8: #{tpu_custom_call.1} parent=1 // loop_exit
      _
    %142 = vsyncpa [#allocation3], 1
    %s143 = scalar_lea.sflag [#allocation3], 1
    %144 = vsyncpa %s143, 1
    %145 = vsyncpa [#allocation4], 1
    %s146 = scalar_lea.sflag [#allocation4], 1
    %147 = vsyncpa %s146, 1

// kernel: tpu_custom_call.1
$region0: #{tpu_custom_call.1}
  #allocation0 [shape = 'u32[]', space=smem, size = 0x4, offset = 0x4, fixed_abs, tag = 'smem constant byte address 0x4 - core index']
  #allocation1 [shape = 'u32[144,128]{1,0:T(1,128)}', space=vmem, size = 0x12000, scoped, tag = 'internal scratch']
  %s0 = inlined_call_operand.hbm [shape: f32[2,128,128], index: 0, kind: input, shape index: {}]
  %s1 = inlined_call_operand.vmem [shape: f32[1,128], index: 1, kind: input, shape index: {}]
  %s2 = inlined_call_operand.vmem [shape: f32[1,128], index: 2, kind: input, shape index: {}]
  %s3 = inlined_call_operand.hbm [shape: bf16[128,384], index: 3, kind: input, shape index: {}]
  %s4 = inlined_call_operand.vmem [shape: f32[1,384], index: 4, kind: input, shape index: {}]
  %s5 = inlined_call_operand.hbm [shape: bf16[2,128,384], index: 5, kind: output, shape index: {}]
  %s6 = sld [smem:[#allocation0]]
  $region61: #{tpu_custom_call.1} parent=0
    _
  %s8 = ssub.s32 1, %s6
  %s9 = scalar_select 0, %s8, %s6
  $region1: #{tpu_custom_call.1} parent=0
    #allocation2 [shape = 'u8[65536]{0}', space=vmem, size = 0x10000, scoped, tag = 'input window, operand 0']
    #allocation3 [shape = 's32[2]{0}', space=sflag, size = 0x8, scoped, tag = 'scoped memory for tpu_custom_call.1']
    #allocation4 [shape = 's32[2]{0}', space=sflag, size = 0x8, scoped, tag = 'scoped memory for tpu_custom_call.1']
    #allocation5 [shape = 'u8[98304]{0}', space=vmem, size = 0x18000, scoped, tag = 'input window, operand 3, single buffered']
    #allocation6 [shape = 's32[1]{0}', space=sflag, size = 0x4, scoped, tag = 'scoped memory for tpu_custom_call.1']
    #allocation7 [shape = 'u8[98304]{0}', space=vmem, size = 0x18000, scoped, tag = 'output window, operand 0']
    %10 = vsyncpa [#allocation3], 0
    %s11 = scalar_lea.sflag [#allocation3], 1
    %12 = vsyncpa %s11, 0
    %13 = vsyncpa [#allocation6], 0
    %14 = vsyncpa [#allocation4], 0
    %s15 = scalar_lea.sflag [#allocation4], 1
    %16 = vsyncpa %s15, 0
    loop: start=0, step=1, limit=6
    $region2: #{tpu_custom_call.1} parent=1 // loop_pre_header
      _
    $region3: #{tpu_custom_call.1} parent=1 // loop_header
      %s18 = sphi 0, %s22
      %p19 = scmp.ge.s32.totalorder %s18, 6
      %s25 = sphi 0, %s37
      %s26 = sphi 0, %s33
      %s27 = sphi 0, %s25
      %s28 = sphi 0, %s26
      %s29 = sphi 0, %s27
      %s30 = sphi 0, %s28
      %s42 = sphi 0, %s44
      %s45 = sphi 0, %s42
      %s46 = sphi 0, %s45
      %s62 = sphi 0, %s46
      %s66 = sphi 0, %s66
      %s68 = sphi 0, %s66
      %s69 = sphi 0, %s68
      %s83 = sphi 0, %s69
      %s87 = sphi 0, %s87
      %s89 = sphi 0, %s87
      %s90 = sphi 0, %s89
      %s104 = sphi 0, %s90
      %s108 = sphi 0, %s108
      %s110 = sphi 0, %s108
      %s111 = sphi 0, %s110
      %s125 = sphi 0, %s111
      %s129 = sphi 0, %s129
      %s131 = sphi 0, %s129
      %s132 = sphi 0, %s131
      %s146 = sphi 0, %s132
      %s154 = sphi 0, %s156
      %s157 = sphi 0, %s154
      %s158 = sphi 0, %s157
      %s174 = sphi 0, %s158
    $region4: #{tpu_custom_call.1} parent=1 // loop_header_branch
      %21 = sbr.rel (%p19) target = $region8
    $region5: #{tpu_custom_call.1} parent=1 // loop_body
      %s23 = ssub.s32 %s18, 1
      %s24 = ssub.s32 %s18, 2
      %s31 = sadd.s32 1, %s26
      %p32 = scmp.ge.s32.totalorder %s31, 2
      %s33 = scalar_select %p32, 0, %s31
      %s34 = sadd.s32 1, %s25
      %s35 = scalar_select %p32, %s34, %s25
      %p36 = scmp.ge.s32.totalorder %s35, 2
      %s37 = scalar_select %p36, 0, %s35
      %s38 = ssub.s32 %s25, %s37
      %s39 = ssub.s32 %s26, %s33
      %s40 = sor.u32 %s38, %s39
      %p41 = scmp.eq.s32.totalorder %s40, 0
      %s43 = sadd.s32 %s42, 1
      %s44 = scalar_select %p41, %s42, %s43
      %p47 = pneg %p41
      %p48 = scmp.eq.s32.totalorder %s18, 3
      %p49 = por %p47, %p48
      %p50 = scmp.ne.s32.totalorder %s42, %s45
      %p51 = scmp.eq.s32.totalorder %s18, 0
      %p52 = por %p50, %p51
      %p53 = scmp.ne.s32.totalorder %s42, %s45
      %p54 = scmp.eq.s32.totalorder %s23, 3
      %p55 = por %p53, %p54
      %p56 = scmp.ne.s32.totalorder %s45, %s46
      %p57 = scmp.eq.s32.totalorder %s23, 0
      %p58 = por %p56, %p57
      %p59 = scmp.ne.s32.totalorder %s45, %s46
      %p60 = scmp.eq.s32.totalorder %s24, 3
      %p61 = por %p59, %p60
      %p63 = scmp.ne.s32.totalorder %s46, %s62
      %p64 = scmp.eq.s32.totalorder %s24, 0
      %p65 = por %p63, %p64
      %s67 = sadd.s32 %s66, 1
      %p70 = scmp.eq.s32.totalorder %s18, 3
      %p71 = scmp.ne.s32.totalorder %s66, %s68
      %p72 = scmp.eq.s32.totalorder %s18, 0
      %p73 = por %p71, %p72
      %p74 = scmp.ne.s32.totalorder %s66, %s68
      %p75 = scmp.eq.s32.totalorder %s23, 3
      %p76 = por %p74, %p75
      %p77 = scmp.ne.s32.totalorder %s68, %s69
      %p78 = scmp.eq.s32.totalorder %s23, 0
      %p79 = por %p77, %p78
      %p80 = scmp.ne.s32.totalorder %s68, %s69
      %p81 = scmp.eq.s32.totalorder %s24, 3
      %p82 = por %p80, %p81
      %p84 = scmp.ne.s32.totalorder %s69, %s83
      %p85 = scmp.eq.s32.totalorder %s24, 0
      %p86 = por %p84, %p85
      %s88 = sadd.s32 %s87, 1
      %p91 = scmp.eq.s32.totalorder %s18, 3
      %p92 = scmp.ne.s32.totalorder %s87, %s89
      %p93 = scmp.eq.s32.totalorder %s18, 0
      %p94 = por %p92, %p93
      %p95 = scmp.ne.s32.totalorder %s87, %s89
      %p96 = scmp.eq.s32.totalorder %s23, 3
      %p97 = por %p95, %p96
      %p98 = scmp.ne.s32.totalorder %s89, %s90
      %p99 = scmp.eq.s32.totalorder %s23, 0
      %p100 = por %p98, %p99
      %p101 = scmp.ne.s32.totalorder %s89, %s90
      %p102 = scmp.eq.s32.totalorder %s24, 3
      %p103 = por %p101, %p102
      %p105 = scmp.ne.s32.totalorder %s90, %s104
      %p106 = scmp.eq.s32.totalorder %s24, 0
      %p107 = por %p105, %p106
      %s109 = sadd.s32 %s108, 1
      %p112 = scmp.eq.s32.totalorder %s18, 3
      %p113 = scmp.ne.s32.totalorder %s108, %s110
      %p114 = scmp.eq.s32.totalorder %s18, 0
      %p115 = por %p113, %p114
      %p116 = scmp.ne.s32.totalorder %s108, %s110
      %p117 = scmp.eq.s32.totalorder %s23, 3
      %p118 = por %p116, %p117
      %p119 = scmp.ne.s32.totalorder %s110, %s111
      %p120 = scmp.eq.s32.totalorder %s23, 0
      %p121 = por %p119, %p120
      %p122 = scmp.ne.s32.totalorder %s110, %s111
      %p123 = scmp.eq.s32.totalorder %s24, 3
      %p124 = por %p122, %p123
      %p126 = scmp.ne.s32.totalorder %s111, %s125
      %p127 = scmp.eq.s32.totalorder %s24, 0
      %p128 = por %p126, %p127
      %s130 = sadd.s32 %s129, 1
      %p133 = scmp.eq.s32.totalorder %s18, 3
      %p134 = scmp.ne.s32.totalorder %s129, %s131
      %p135 = scmp.eq.s32.totalorder %s18, 0
      %p136 = por %p134, %p135
      %p137 = scmp.ne.s32.totalorder %s129, %s131
      %p138 = scmp.eq.s32.totalorder %s23, 3
      %p139 = por %p137, %p138
      %p140 = scmp.ne.s32.totalorder %s131, %s132
      %p141 = scmp.eq.s32.totalorder %s23, 0
      %p142 = por %p140, %p141
      %p143 = scmp.ne.s32.totalorder %s131, %s132
      %p144 = scmp.eq.s32.totalorder %s24, 3
      %p145 = por %p143, %p144
      %p147 = scmp.ne.s32.totalorder %s132, %s146
      %p148 = scmp.eq.s32.totalorder %s24, 0
      %p149 = por %p147, %p148
      %s150 = ssub.s32 %s25, %s37
      %s151 = ssub.s32 %s26, %s33
      %s152 = sor.u32 %s150, %s151
      %p153 = scmp.eq.s32.totalorder %s152, 0
      %s155 = sadd.s32 %s154, 1
      %s156 = scalar_select %p153, %s154, %s155
      %p159 = pneg %p153
      %p160 = scmp.eq.s32.totalorder %s18, 3
      %p161 = por %p159, %p160
      %p162 = scmp.ne.s32.totalorder %s154, %s157
      %p163 = scmp.eq.s32.totalorder %s18, 0
      %p164 = por %p162, %p163
      %p165 = scmp.ne.s32.totalorder %s154, %s157
      %p166 = scmp.eq.s32.totalorder %s23, 3
      %p167 = por %p165, %p166
      %p168 = scmp.ne.s32.totalorder %s157, %s158
      %p169 = scmp.eq.s32.totalorder %s23, 0
      %p170 = por %p168, %p169
      %p171 = scmp.ne.s32.totalorder %s157, %s158
      %p172 = scmp.eq.s32.totalorder %s24, 3
      %p173 = por %p171, %p172
      %p175 = scmp.ne.s32.totalorder %s158, %s174
      %p176 = scmp.eq.s32.totalorder %s24, 0
      %p177 = por %p175, %p176
      %p178 = scmp.le.s32.totalorder 1, %s18
      %p179 = scmp.lt.s32.totalorder %s18, 5
      %p180 = pnand %p178, %p179
      %p181 = pneg %p180
      // Predicated region
      $region9: #{tpu_custom_call.1} parent=5 // pred_check
        _
      $region10: #{tpu_custom_call.1} parent=5 // pred_check_branch
        %183 = sbr.rel (%p180) target = $region12
      $region11: #{tpu_custom_call.1} parent=5 // pred_region
        %s184 = ssub.s32 %s18, 1
        // Predicated region
        $region13: #{tpu_custom_call.1} parent=11 // pred_check
          %p185 = pneg %p79
        $region14: #{tpu_custom_call.1} parent=11 // pred_check_branch
          %187 = sbr.rel (%p185) target = $region16
        $region15: #{tpu_custom_call.1} parent=11 // pred_region
          _
        $region16: #{tpu_custom_call.1} parent=11 // pred_fallthru
          _
        // Predicated region
        $region17: #{tpu_custom_call.1} parent=11 // pred_check
          %p188 = pneg %p100
        $region18: #{tpu_custom_call.1} parent=11 // pred_check_branch
          %190 = sbr.rel (%p188) target = $region20
        $region19: #{tpu_custom_call.1} parent=11 // pred_region
          _
        $region20: #{tpu_custom_call.1} parent=11 // pred_fallthru
          _
        // Predicated region
        $region21: #{tpu_custom_call.1} parent=11 // pred_check
          %p191 = pneg %p121
        $region22: #{tpu_custom_call.1} parent=11 // pred_check_branch
          %193 = sbr.rel (%p191) target = $region24
        $region23: #{tpu_custom_call.1} parent=11 // pred_region
          %s195 = ssub.s32 3072, 3072
          %196 = vsyncadd [#allocation6], %s195
          %s197 = sshll.u32 [#allocation5], 4
          %s198 = int_to_ptr.vmem [resolvable:$true] %s197
          %203 = dma.hbm_to_vmem [thread:$0]  %s3, 3072, %s198, [#allocation6], 192, 192, 12
        $region24: #{tpu_custom_call.1} parent=11 // pred_fallthru
          _
        // Predicated region
        $region25: #{tpu_custom_call.1} parent=11 // pred_check
          %p204 = pneg %p142
        $region26: #{tpu_custom_call.1} parent=11 // pred_check_branch
          %206 = sbr.rel (%p204) target = $region28
        $region27: #{tpu_custom_call.1} parent=11 // pred_region
          _
        $region28: #{tpu_custom_call.1} parent=11 // pred_fallthru
          _
      $region12: #{tpu_custom_call.1} parent=5 // pred_fallthru
        _
      %p207 = scmp.lt.s32.totalorder %s18, 4
      // Predicated region
      $region29: #{tpu_custom_call.1} parent=5 // pred_check
        %p208 = pneg %p207
      $region30: #{tpu_custom_call.1} parent=5 // pred_check_branch
        %210 = sbr.rel (%p208) target = $region32
      $region31: #{tpu_custom_call.1} parent=5 // pred_region
        // Predicated region
        $region33: #{tpu_custom_call.1} parent=31 // pred_check
          %p211 = pneg %p52
        $region34: #{tpu_custom_call.1} parent=31 // pred_check_branch
          %213 = sbr.rel (%p211) target = $region36
        $region35: #{tpu_custom_call.1} parent=31 // pred_region
          %s214 = sand.u32 %s42, 1
          %s215 = scalar_lea.sflag [#allocation3], %s214
          %s216 = sand.u32 %s42, 1
          %s217 = smul.addr %s216, 64
          %s218 = scalar_lea.vmem [#allocation2], %s217
          %s219 = smul.u32 8, %s26
          %s221 = ssub.s32 1024, 1024
          %222 = vsyncadd %s215, %s221
          %s223 = smul.addr %s25, 16
          %s224 = sadd.s32 %s219, %s223
          %s225 = smul.addr %s224, 128
          %s226 = scalar_lea.hbm %s0, %s225
          %s227 = sshll.u32 %s218, 4
          %s228 = int_to_ptr.vmem [resolvable:$true] %s227
          %233 = dma.hbm_to_vmem [thread:$0]  %s226, 1024, %s228, %s215, 128, 128, 8
        $region36: #{tpu_custom_call.1} parent=31 // pred_fallthru
          _
      $region32: #{tpu_custom_call.1} parent=5 // pred_fallthru
        _
      %p234 = scmp.le.s32.totalorder 1, %s18
      %p235 = scmp.lt.s32.totalorder %s18, 5
      %p236 = pnand %p234, %p235
      %p237 = pneg %p236
      // Predicated region
      $region37: #{tpu_custom_call.1} parent=5 // pred_check
        _
      $region38: #{tpu_custom_call.1} parent=5 // pred_check_branch
        %239 = sbr.rel (%p236) target = $region40
      $region39: #{tpu_custom_call.1} parent=5 // pred_region
        %s240 = ssub.s32 %s18, 1
        %s241 = sand.u32 %s45, 1
        %s242 = scalar_lea.sflag [#allocation3], %s241
        %s243 = sand.u32 %s45, 1
        %s244 = smul.addr %s243, 64
        %s245 = scalar_lea.vmem [#allocation2], %s244
        // Predicated region
        $region41: #{tpu_custom_call.1} parent=39 // pred_check
          %p246 = pneg %p58
        $region42: #{tpu_custom_call.1} parent=39 // pred_check_branch
          %248 = sbr.rel (%p246) target = $region44
        $region43: #{tpu_custom_call.1} parent=39 // pred_region
          %249 = dma.done %s242, 1024
        $region44: #{tpu_custom_call.1} parent=39 // pred_fallthru
          _
        // Predicated region
        $region45: #{tpu_custom_call.1} parent=39 // pred_check
          %p250 = pneg %p121
        $region46: #{tpu_custom_call.1} parent=39 // pred_check_branch
          %252 = sbr.rel (%p250) target = $region48
        $region47: #{tpu_custom_call.1} parent=39 // pred_region
          %253 = dma.done [#allocation6], 3072
        $region48: #{tpu_custom_call.1} parent=39 // pred_fallthru
          _
        %s254 = sand.u32 %s45, 1
        %s255 = scalar_lea.sflag [#allocation3], %s254
        %s256 = sand.u32 %s45, 1
        %s257 = smul.addr %s256, 64
        %s258 = scalar_lea.vmem [#allocation2], %s257
        %p259 = pneg %p58
        %p260 = pneg %p55
        %p261 = pneg %p79
        %p262 = pneg %p76
        %p263 = pneg %p100
        %p264 = pneg %p97
        %p265 = pneg %p121
        %p266 = pneg %p118
        %p267 = pneg %p142
        %p268 = pneg %p139
        %p269 = pneg %p170
        %p270 = pneg %p167
        %s271 = sand.u32 %s157, 1
        %s272 = scalar_lea.sflag [#allocation4], %s271
        %s273 = sand.u32 %s157, 1
        %s274 = smul.addr %s273, 96
        %s275 = scalar_lea.vmem [#allocation7], %s274
        %s276 = smul.u32 8, %s28
        %s277 = smul.u32 8, %s28
        %v279 = vld [vmem:[%s245] sm:$0xff]
        %v280 = vld [vmem:[%s245 + $0x8] sm:$0xff]
        %v281 = vld [vmem:[%s245 + $0x10] sm:$0xff]
        %v282 = vld [vmem:[%s245 + $0x18] sm:$0xff]
        %v283 = vld [vmem:[%s245 + $0x20] sm:$0xff]
        %v284 = vld [vmem:[%s245 + $0x28] sm:$0xff]
        %v285 = vld [vmem:[%s245 + $0x30] sm:$0xff]
        %v286 = vld [vmem:[%s245 + $0x38] sm:$0xff]
        %v287 = vld [vmem:[%s1] sm:$0x1]
        %v288 = vld [vmem:[%s2] sm:$0x1]
        %289 = vadd.xlane.f32.xlu0 %v279
        %v290 = vpop.xlane.xlu0 %289
        %291 = vadd.xlane.f32.xlu0 %v280
        %v292 = vpop.xlane.xlu0 %291
        %293 = vadd.xlane.f32.xlu0 %v281
        %v294 = vpop.xlane.xlu0 %293
        %295 = vadd.xlane.f32.xlu0 %v282
        %v296 = vpop.xlane.xlu0 %295
        %297 = vadd.xlane.f32.xlu0 %v283
        %v298 = vpop.xlane.xlu0 %297
        %299 = vadd.xlane.f32.xlu0 %v284
        %v300 = vpop.xlane.xlu0 %299
        %301 = vadd.xlane.f32.xlu0 %v285
        %v302 = vpop.xlane.xlu0 %301
        %303 = vadd.xlane.f32.xlu0 %v286
        %v304 = vpop.xlane.xlu0 %303
        %v305 = vrcp.pop 128.0
        %v306 = vmul.f32 %v290, %v305
        %v307 = vmul.f32 %v292, %v305
        %v308 = vmul.f32 %v294, %v305
        %v309 = vmul.f32 %v296, %v305
        %v310 = vmul.f32 %v298, %v305
        %v311 = vmul.f32 %v300, %v305
        %v312 = vmul.f32 %v302, %v305
        %v313 = vmul.f32 %v304, %v305
        %v314 = vsub.f32 %v279, %v306
        %v315 = vsub.f32 %v280, %v307
        %v316 = vsub.f32 %v281, %v308
        %v317 = vsub.f32 %v282, %v309
        %v318 = vsub.f32 %v283, %v310
        %v319 = vsub.f32 %v284, %v311
        %v320 = vsub.f32 %v285, %v312
        %v321 = vsub.f32 %v286, %v313
        %v322 = vmul.f32 %v314, %v314
        %v323 = vmul.f32 %v315, %v315
        %v324 = vmul.f32 %v316, %v316
        %v325 = vmul.f32 %v317, %v317
        %v326 = vmul.f32 %v318, %v318
        %v327 = vmul.f32 %v319, %v319
        %v328 = vmul.f32 %v320, %v320
        %v329 = vmul.f32 %v321, %v321
        %330 = vadd.xlane.f32.xlu0 %v322
        %v331 = vpop.xlane.xlu0 %330
        %332 = vadd.xlane.f32.xlu0 %v323
        %v333 = vpop.xlane.xlu0 %332
        %334 = vadd.xlane.f32.xlu0 %v324
        %v335 = vpop.xlane.xlu0 %334
        %336 = vadd.xlane.f32.xlu0 %v325
        %v337 = vpop.xlane.xlu0 %336
        %338 = vadd.xlane.f32.xlu0 %v326
        %v339 = vpop.xlane.xlu0 %338
        %340 = vadd.xlane.f32.xlu0 %v327
        %v341 = vpop.xlane.xlu0 %340
        %342 = vadd.xlane.f32.xlu0 %v328
        %v343 = vpop.xlane.xlu0 %342
        %344 = vadd.xlane.f32.xlu0 %v329
        %v345 = vpop.xlane.xlu0 %344
        %v346 = vmul.f32 %v331, %v305
        %v347 = vmul.f32 %v333, %v305
        %v348 = vmul.f32 %v335, %v305
        %v349 = vmul.f32 %v337, %v305
        %v350 = vmul.f32 %v339, %v305
        %v351 = vmul.f32 %v341, %v305
        %v352 = vmul.f32 %v343, %v305
        %v353 = vmul.f32 %v345, %v305
        %v354 = vadd.f32 %v346, 1e-05
        %v355 = vadd.f32 %v347, 1e-05
        %v356 = vadd.f32 %v348, 1e-05
        %v357 = vadd.f32 %v349, 1e-05
        %v358 = vadd.f32 %v350, 1e-05
        %v359 = vadd.f32 %v351, 1e-05
        %v360 = vadd.f32 %v352, 1e-05
        %v361 = vadd.f32 %v353, 1e-05
        %v362 = vrsqrt.pop %v354
        %v363 = vrsqrt.pop %v355
        %v364 = vrsqrt.pop %v356
        %v365 = vrsqrt.pop %v357
        %v366 = vrsqrt.pop %v358
        %v367 = vrsqrt.pop %v359
        %v368 = vrsqrt.pop %v360
        %v369 = vrsqrt.pop %v361
        %v370 = vmul.f32 %v314, %v362
        %v371 = vmul.f32 %v315, %v363
        %v372 = vmul.f32 %v316, %v364
        %v373 = vmul.f32 %v317, %v365
        %v374 = vmul.f32 %v318, %v366
        %v375 = vmul.f32 %v319, %v367
        %v376 = vmul.f32 %v320, %v368
        %v377 = vmul.f32 %v321, %v369
        %v379 = vlaneseq
        %v380 = vshrl.u32 %v379, 7
        %v381 = vsub.s32 0, %v380
        %v382 = vrot.slane %v287, %v381
        %v384 = vmul.f32 %v370, %v382
        %v385 = vmul.f32 %v371, %v382
        %v386 = vmul.f32 %v372, %v382
        %v387 = vmul.f32 %v373, %v382
        %v388 = vmul.f32 %v374, %v382
        %v389 = vmul.f32 %v375, %v382
        %v390 = vmul.f32 %v376, %v382
        %v391 = vmul.f32 %v377, %v382
        %v393 = vlaneseq
        %v394 = vshrl.u32 %v393, 7
        %v395 = vsub.s32 0, %v394
        %v396 = vrot.slane %v288, %v395
        %v398 = vadd.f32 %v384, %v396
        %v399 = vadd.f32 %v385, %v396
        %v400 = vadd.f32 %v386, %v396
        %v401 = vadd.f32 %v387, %v396
        %v402 = vadd.f32 %v388, %v396
        %v403 = vadd.f32 %v389, %v396
        %v404 = vadd.f32 %v390, %v396
        %v405 = vadd.f32 %v391, %v396
        %v406 = vpack.c.bf16 %v399, %v398
        %v407 = vpack.c.bf16 %v401, %v400
        %v408 = vpack.c.bf16 %v403, %v402
        %v409 = vpack.c.bf16 %v405, %v404
        %v410 = vld [vmem:[#allocation5] sm:$0xff]
        %v411 = vld [vmem:[#allocation5 + $0x8] sm:$0xf]
        %v412 = vld [vmem:[#allocation5 + $0xc] sm:$0xff]
        %v413 = vld [vmem:[#allocation5 + $0x14] sm:$0xf]
        %v414 = vld [vmem:[#allocation5 + $0x18] sm:$0xff]
        %v415 = vld [vmem:[#allocation5 + $0x20] sm:$0xf]
        %v416 = vld [vmem:[#allocation5 + $0x24] sm:$0xff]
        %v417 = vld [vmem:[#allocation5 + $0x2c] sm:$0xf]
        %v418 = vld [vmem:[#allocation5 + $0x30] sm:$0xff]
        %v419 = vld [vmem:[#allocation5 + $0x38] sm:$0xf]
        %v420 = vld [vmem:[#allocation5 + $0x3c] sm:$0xff]
        %v421 = vld [vmem:[#allocation5 + $0x44] sm:$0xf]
        %v422 = vld [vmem:[#allocation5 + $0x48] sm:$0xff]
        %v423 = vld [vmem:[#allocation5 + $0x50] sm:$0xf]
        %v424 = vld [vmem:[#allocation5 + $0x54] sm:$0xff]
        %v425 = vld [vmem:[#allocation5 + $0x5c] sm:$0xf]
        %v426 = vld [vmem:[#allocation5 + $0x60] sm:$0xff]
        %v427 = vld [vmem:[#allocation5 + $0x68] sm:$0xf]
        %v428 = vld [vmem:[#allocation5 + $0x6c] sm:$0xff]
        %v429 = vld [vmem:[#allocation5 + $0x74] sm:$0xf]
        %v430 = vld [vmem:[#allocation5 + $0x78] sm:$0xff]
        %v431 = vld [vmem:[#allocation5 + $0x80] sm:$0xf]
        %v432 = vld [vmem:[#allocation5 + $0x84] sm:$0xff]
        %v433 = vld [vmem:[#allocation5 + $0x8c] sm:$0xf]
        %v434 = vld [vmem:[#allocation5 + $0x90] sm:$0xff]
        %v435 = vld [vmem:[#allocation5 + $0x98] sm:$0xf]
        %v436 = vld [vmem:[#allocation5 + $0x9c] sm:$0xff]
        %v437 = vld [vmem:[#allocation5 + $0xa4] sm:$0xf]
        %v438 = vld [vmem:[#allocation5 + $0xa8] sm:$0xff]
        %v439 = vld [vmem:[#allocation5 + $0xb0] sm:$0xf]
        %v440 = vld [vmem:[#allocation5 + $0xb4] sm:$0xff]
        %v441 = vld [vmem:[#allocation5 + $0xbc] sm:$0xf]
        %v442 = vld [vmem:[%s4] sm:$0x7]
        %v444 = vlaneseq
        %v445 = vshrl.u32 %v444, 7
        %v446 = vsub.s32 0, %v445
        %v447 = vrot.slane %v442, %v446
        %v448 = vlaneseq
        %v449 = vshrl.u32 %v448, 7
        %v450 = vsub.s32 1, %v449
        %v451 = vrot.slane %v442, %v450
        %v452 = vlaneseq
        %v453 = vshrl.u32 %v452, 7
        %v454 = vsub.s32 2, %v453
        %v455 = vrot.slane %v442, %v454
        %v491 = vunpack.c.l.b16 %v410
        %v492 = vunpack.c.h.b16 %v410
        %v493 = vunpack.c.l.b16 %v411
        %v494 = vunpack.c.l.b16 %v412
        %v495 = vunpack.c.h.b16 %v412
        %v496 = vunpack.c.l.b16 %v413
        %v497 = vunpack.c.l.b16 %v414
        %v498 = vunpack.c.h.b16 %v414
        %v499 = vunpack.c.l.b16 %v415
        %v500 = vunpack.c.l.b16 %v416
        %v501 = vunpack.c.h.b16 %v416
        %v502 = vunpack.c.l.b16 %v417
        %v503 = vunpack.c.l.b16 %v418
        %v504 = vunpack.c.h.b16 %v418
        %v505 = vunpack.c.l.b16 %v419
        %v506 = vunpack.c.l.b16 %v420
        %v507 = vunpack.c.h.b16 %v420
        %v508 = vunpack.c.l.b16 %v421
        %v509 = vunpack.c.l.b16 %v422
        %v510 = vunpack.c.h.b16 %v422
        %v511 = vunpack.c.l.b16 %v423
        %v512 = vunpack.c.l.b16 %v424
        %v513 = vunpack.c.h.b16 %v424
        %v514 = vunpack.c.l.b16 %v425
        %v515 = vunpack.c.l.b16 %v426
        %v516 = vunpack.c.h.b16 %v426
        %v517 = vunpack.c.l.b16 %v427
        %v518 = vunpack.c.l.b16 %v428
        %v519 = vunpack.c.h.b16 %v428
        %v520 = vunpack.c.l.b16 %v429
        %v521 = vunpack.c.l.b16 %v430
        %v522 = vunpack.c.h.b16 %v430
        %v523 = vunpack.c.l.b16 %v431
        %v524 = vunpack.c.l.b16 %v432
        %v525 = vunpack.c.h.b16 %v432
        %v526 = vunpack.c.l.b16 %v433
        %v527 = vunpack.c.l.b16 %v434
        %v528 = vunpack.c.h.b16 %v434
        %v529 = vunpack.c.l.b16 %v435
        %v530 = vunpack.c.l.b16 %v436
        %v531 = vunpack.c.h.b16 %v436
        %v532 = vunpack.c.l.b16 %v437
        %v533 = vunpack.c.l.b16 %v438
        %v534 = vunpack.c.h.b16 %v438
        %v535 = vunpack.c.l.b16 %v439
        %v536 = vunpack.c.l.b16 %v440
        %v537 = vunpack.c.h.b16 %v440
        %v538 = vunpack.c.l.b16 %v441
        %v539 = vpack.c.b16 %v494, %v491
        %v540 = vpack.c.b16 %v495, %v492
        %v541 = vpack.c.b16 %v496, %v493
        %v542 = vpack.c.b16 %v500, %v497
        %v543 = vpack.c.b16 %v501, %v498
        %v544 = vpack.c.b16 %v502, %v499
        %v545 = vpack.c.b16 %v506, %v503
        %v546 = vpack.c.b16 %v507, %v504
        %v547 = vpack.c.b16 %v508, %v505
        %v548 = vpack.c.b16 %v512, %v509
        %v549 = vpack.c.b16 %v513, %v510
        %v550 = vpack.c.b16 %v514, %v511
        %v551 = vpack.c.b16 %v518, %v515
        %v552 = vpack.c.b16 %v519, %v516
        %v553 = vpack.c.b16 %v520, %v517
        %v554 = vpack.c.b16 %v524, %v521
        %v555 = vpack.c.b16 %v525, %v522
        %v556 = vpack.c.b16 %v526, %v523
        %v557 = vpack.c.b16 %v530, %v527
        %v558 = vpack.c.b16 %v531, %v528
        %v559 = vpack.c.b16 %v532, %v529
        %v560 = vpack.c.b16 %v536, %v533
        %v561 = vpack.c.b16 %v537, %v534
        %v562 = vpack.c.b16 %v538, %v535
        %587 = vmatprep.subr.bf16.mxu0 %v561
        %588 = vmatpush1.bf16.msra.mxu0 %v560
        %589 = vmatprep.subr.bf16.mxu0 %v558
        %590 = vmatpush1.bf16.msra.mxu0 %v557
        %591 = vmatprep.subr.bf16.mxu0 %v555
        %592 = vmatpush1.bf16.msra.mxu0 %v554
        %593 = vmatprep.subr.bf16.mxu0 %v552
        %594 = vmatpush1.bf16.msra.mxu0 %v551
        %595 = vmatprep.subr.bf16.mxu0 %v549
        %596 = vmatpush1.bf16.msra.mxu0 %v548
        %597 = vmatprep.subr.bf16.mxu0 %v546
        %598 = vmatpush1.bf16.msra.mxu0 %v545
        %599 = vmatprep.subr.bf16.mxu0 %v543
        %600 = vmatpush1.bf16.msra.mxu0 %v542
        %601 = vmatprep.subr.bf16.mxu0 %v540
        %602 = vmatpush1.bf16.msra.mxu0 %v539
        %603 = vmatprep.subr.bf16.mxu0 0
        %604 = vmatpush2.bf16.msra.mxu0 0
        %605 = vmatprep.subr.bf16.mxu0 0
        %606 = vmatpush2.bf16.msra.mxu0 0
        %607 = vmatprep.subr.bf16.mxu0 0
        %608 = vmatpush2.bf16.msra.mxu0 0
        %609 = vmatprep.subr.bf16.mxu0 0
        %610 = vmatpush2.bf16.msra.mxu0 0
        %611 = vmatprep.subr.bf16.mxu0 0
        %612 = vmatpush2.bf16.msra.mxu0 0
        %613 = vmatprep.subr.bf16.mxu0 0
        %614 = vmatpush2.bf16.msra.mxu0 0
        %615 = vmatprep.subr.bf16.mxu0 0
        %616 = vmatpush2.bf16.msra.mxu0 0
        %617 = vmatprep.subr.bf16.mxu0 0
        %618 = vmatpush2.bf16.msra.mxu0 0
        %619 = vmatprep.mubr.bf16.mxu0 0
        %620 = vmatmul.mubr.bf16.gmra.mxu0 %v406
        %v621 = vpop.f32.mrf.mxu0
        %v622 = vadd.f32 %v447, %v621
        %v623 = vpop.f32.mrf.mxu0
        %v624 = vadd.f32 %v451, %v623
        %v625 = vpop.f32.mrf.mxu0
        %v626 = vadd.f32 %v447, %v625
        %v627 = vpop.f32.mrf.mxu0
        %v628 = vadd.f32 %v451, %v627
        %629 = vmatprep.mubr.bf16.mxu0 0
        %630 = vmatmul.mubr.bf16.gmra.mxu0 %v407
        %v631 = vpop.f32.mrf.mxu0
        %v632 = vadd.f32 %v447, %v631
        %v633 = vpop.f32.mrf.mxu0
        %v634 = vadd.f32 %v451, %v633
        %v635 = vpop.f32.mrf.mxu0
        %v636 = vadd.f32 %v447, %v635
        %v637 = vpop.f32.mrf.mxu0
        %v638 = vadd.f32 %v451, %v637
        %639 = vmatprep.mubr.bf16.mxu0 0
        %640 = vmatmul.mubr.bf16.gmra.mxu0 %v408
        %v641 = vpop.f32.mrf.mxu0
        %v642 = vadd.f32 %v447, %v641
        %v643 = vpop.f32.mrf.mxu0
        %v644 = vadd.f32 %v451, %v643
        %v645 = vpop.f32.mrf.mxu0
        %v646 = vadd.f32 %v447, %v645
        %v647 = vpop.f32.mrf.mxu0
        %v648 = vadd.f32 %v451, %v647
        %649 = vmatprep.mubr.bf16.mxu0 0
        %650 = vmatmul.mubr.bf16.gmra.mxu0 %v409
        %v651 = vpop.f32.mrf.mxu0
        %v652 = vadd.f32 %v447, %v651
        %v653 = vpop.f32.mrf.mxu0
        %v654 = vadd.f32 %v451, %v653
        %v655 = vpop.f32.mrf.mxu0
        %v656 = vadd.f32 %v447, %v655
        %v657 = vpop.f32.mrf.mxu0
        %v658 = vadd.f32 %v451, %v657
        %659 = vdwg.mxu0
        %660 = vmatprep.subr.bf16.mxu0 0
        %661 = vmatpush1.bf16.msra.mxu0 %v562
        %662 = vmatprep.subr.bf16.mxu0 0
        %663 = vmatpush1.bf16.msra.mxu0 %v559
        %664 = vmatprep.subr.bf16.mxu0 0
        %665 = vmatpush1.bf16.msra.mxu0 %v556
        %666 = vmatprep.subr.bf16.mxu0 0
        %667 = vmatpush1.bf16.msra.mxu0 %v553
        %668 = vmatprep.subr.bf16.mxu0 0
        %669 = vmatpush1.bf16.msra.mxu0 %v550
        %670 = vmatprep.subr.bf16.mxu0 0
        %671 = vmatpush1.bf16.msra.mxu0 %v547
        %672 = vmatprep.subr.bf16.mxu0 0
        %673 = vmatpush1.bf16.msra.mxu0 %v544
        %674 = vmatprep.subr.bf16.mxu0 0
        %675 = vmatpush1.bf16.msra.mxu0 %v541
        %676 = vmatprep.subr.bf16.mxu0 0
        %677 = vmatpush2.bf16.msra.mxu0 0
        %678 = vmatprep.subr.bf16.mxu0 0
        %679 = vmatpush2.bf16.msra.mxu0 0
        %680 = vmatprep.subr.bf16.mxu0 0
        %681 = vmatpush2.bf16.msra.mxu0 0
        %682 = vmatprep.subr.bf16.mxu0 0
        %683 = vmatpush2.bf16.msra.mxu0 0
        %684 = vmatprep.subr.bf16.mxu0 0
        %685 = vmatpush2.bf16.msra.mxu0 0
        %686 = vmatprep.subr.bf16.mxu0 0
        %687 = vmatpush2.bf16.msra.mxu0 0
        %688 = vmatprep.subr.bf16.mxu0 0
        %689 = vmatpush2.bf16.msra.mxu0 0
        %690 = vmatprep.subr.bf16.mxu0 0
        %691 = vmatpush2.bf16.msra.mxu0 0
        %692 = vmatprep.mubr.bf16.mxu0 0
        %693 = vmatmul.mubr.bf16.gmra.mxu0 %v406
        %v694 = vpop.f32.mrf.mxu0
        %v695 = vadd.f32 %v455, %v694
        %v696 = vpop.f32.mrf.mxu0
        %v697 = vpop.f32.mrf.mxu0
        %v698 = vadd.f32 %v455, %v697
        %v699 = vpop.f32.mrf.mxu0
        %700 = vmatprep.mubr.bf16.mxu0 0
        %701 = vmatmul.mubr.bf16.gmra.mxu0 %v407
        %v702 = vpop.f32.mrf.mxu0
        %v703 = vadd.f32 %v455, %v702
        %v704 = vpop.f32.mrf.mxu0
        %v705 = vpop.f32.mrf.mxu0
        %v706 = vadd.f32 %v455, %v705
        %v707 = vpop.f32.mrf.mxu0
        %708 = vmatprep.mubr.bf16.mxu0 0
        %709 = vmatmul.mubr.bf16.gmra.mxu0 %v408
        %v710 = vpop.f32.mrf.mxu0
        %v711 = vadd.f32 %v455, %v710
        %v712 = vpop.f32.mrf.mxu0
        %v713 = vpop.f32.mrf.mxu0
        %v714 = vadd.f32 %v455, %v713
        %v715 = vpop.f32.mrf.mxu0
        %716 = vmatprep.mubr.bf16.mxu0 0
        %717 = vmatmul.mubr.bf16.gmra.mxu0 %v409
        %v718 = vpop.f32.mrf.mxu0
        %v719 = vadd.f32 %v455, %v718
        %v720 = vpop.f32.mrf.mxu0
        %v721 = vpop.f32.mrf.mxu0
        %v722 = vadd.f32 %v455, %v721
        %v723 = vpop.f32.mrf.mxu0
        %724 = vdwg.mxu0
        %v725 = vpack.c.bf16 %v626, %v622
        %v726 = vpack.c.bf16 %v628, %v624
        %v727 = vpack.c.bf16 %v698, %v695
        %v728 = vpack.c.bf16 %v636, %v632
        %v729 = vpack.c.bf16 %v638, %v634
        %v730 = vpack.c.bf16 %v706, %v703
        %v731 = vpack.c.bf16 %v646, %v642
        %v732 = vpack.c.bf16 %v648, %v644
        %v733 = vpack.c.bf16 %v714, %v711
        %v734 = vpack.c.bf16 %v656, %v652
        %v735 = vpack.c.bf16 %v658, %v654
        %v736 = vpack.c.bf16 %v722, %v719
        %v749 = vunpack.c.l.b16 %v725
        %v750 = vunpack.c.l.b16 %v726
        %v751 = vunpack.c.l.b16 %v727
        %v752 = vunpack.c.h.b16 %v725
        %v753 = vunpack.c.h.b16 %v726
        %v754 = vunpack.c.h.b16 %v727
        %v755 = vunpack.c.l.b16 %v728
        %v756 = vunpack.c.l.b16 %v729
        %v757 = vunpack.c.l.b16 %v730
        %v758 = vunpack.c.h.b16 %v728
        %v759 = vunpack.c.h.b16 %v729
        %v760 = vunpack.c.h.b16 %v730
        %v761 = vunpack.c.l.b16 %v731
        %v762 = vunpack.c.l.b16 %v732
        %v763 = vunpack.c.l.b16 %v733
        %v764 = vunpack.c.h.b16 %v731
        %v765 = vunpack.c.h.b16 %v732
        %v766 = vunpack.c.h.b16 %v733
        %v767 = vunpack.c.l.b16 %v734
        %v768 = vunpack.c.l.b16 %v735
        %v769 = vunpack.c.l.b16 %v736
        %v770 = vunpack.c.h.b16 %v734
        %v771 = vunpack.c.h.b16 %v735
        %v772 = vunpack.c.h.b16 %v736
        %v773 = vpack.c.b16 %v750, %v749
        %v774 = vpack.c.b16 %v751, %v751
        %v775 = vpack.c.b16 %v753, %v752
        %v776 = vpack.c.b16 %v754, %v754
        %v777 = vpack.c.b16 %v756, %v755
        %v778 = vpack.c.b16 %v757, %v757
        %v779 = vpack.c.b16 %v759, %v758
        %v780 = vpack.c.b16 %v760, %v760
        %v781 = vpack.c.b16 %v762, %v761
        %v782 = vpack.c.b16 %v763, %v763
        %v783 = vpack.c.b16 %v765, %v764
        %v784 = vpack.c.b16 %v766, %v766
        %v785 = vpack.c.b16 %v768, %v767
        %v786 = vpack.c.b16 %v769, %v769
        %v787 = vpack.c.b16 %v771, %v770
        %v788 = vpack.c.b16 %v772, %v772
        %805 = vst [vmem:[%s275] sm:$0xff] %v773
        %806 = vst [vmem:[%s275 + $0x8] sm:$0xf] %v774
        %807 = vst [vmem:[%s275 + $0xc] sm:$0xff] %v775
        %808 = vst [vmem:[%s275 + $0x14] sm:$0xf] %v776
        %809 = vst [vmem:[%s275 + $0x18] sm:$0xff] %v777
        %810 = vst [vmem:[%s275 + $0x20] sm:$0xf] %v778
        %811 = vst [vmem:[%s275 + $0x24] sm:$0xff] %v779
        %812 = vst [vmem:[%s275 + $0x2c] sm:$0xf] %v780
        %813 = vst [vmem:[%s275 + $0x30] sm:$0xff] %v781
        %814 = vst [vmem:[%s275 + $0x38] sm:$0xf] %v782
        %815 = vst [vmem:[%s275 + $0x3c] sm:$0xff] %v783
        %816 = vst [vmem:[%s275 + $0x44] sm:$0xf] %v784
        %817 = vst [vmem:[%s275 + $0x48] sm:$0xff] %v785
        %818 = vst [vmem:[%s275 + $0x50] sm:$0xf] %v786
        %819 = vst [vmem:[%s275 + $0x54] sm:$0xff] %v787
        %820 = vst [vmem:[%s275 + $0x5c] sm:$0xf] %v788
        %s821 = sand.u32 %s157, 1
        %s822 = scalar_lea.sflag [#allocation4], %s821
        %s823 = sand.u32 %s157, 1
        %s824 = smul.addr %s823, 96
        %s825 = scalar_lea.vmem [#allocation7], %s824
        // Predicated region
        $region49: #{tpu_custom_call.1} parent=39 // pred_check
          %p826 = pneg %p167
        $region50: #{tpu_custom_call.1} parent=39 // pred_check_branch
          %828 = sbr.rel (%p826) target = $region52
        $region51: #{tpu_custom_call.1} parent=39 // pred_region
          %s829 = smul.u32 8, %s28
          %s831 = ssub.s32 1536, 1536
          %832 = vsyncadd %s822, %s831
          %s833 = smul.addr %s829, 3
          %s834 = smul.addr %s27, 48
          %s835 = sadd.s32 %s833, %s834
          %s836 = smul.addr %s835, 64
          %s837 = scalar_lea.hbm %s5, %s836
          %s838 = sshll.u32 %s825, 4
          %s839 = int_to_ptr.vmem [resolvable:$true] %s838
          %844 = dma.vmem_to_hbm [thread:$0]  %s839, 1536, %s837, %s822, 192, 192, 12
        $region52: #{tpu_custom_call.1} parent=39 // pred_fallthru
          _
      $region40: #{tpu_custom_call.1} parent=5 // pred_fallthru
        _
      %p845 = scmp.le.s32.totalorder 2, %s18
      // Predicated region
      $region53: #{tpu_custom_call.1} parent=5 // pred_check
        %p846 = pneg %p845
      $region54: #{tpu_custom_call.1} parent=5 // pred_check_branch
        %848 = sbr.rel (%p846) target = $region56
      $region55: #{tpu_custom_call.1} parent=5 // pred_region
        %s849 = ssub.s32 %s18, 2
        // Predicated region
        $region57: #{tpu_custom_call.1} parent=55 // pred_check
          %p850 = pneg %p173
        $region58: #{tpu_custom_call.1} parent=55 // pred_check_branch
          %852 = sbr.rel (%p850) target = $region60
        $region59: #{tpu_custom_call.1} parent=55 // pred_region
          %s853 = sand.u32 %s158, 1
          %s854 = scalar_lea.sflag [#allocation4], %s853
          %s855 = sand.u32 %s158, 1
          %s856 = smul.addr %s855, 96
          %s857 = scalar_lea.vmem [#allocation7], %s856
          %858 = dma.done %s854, 1536
        $region60: #{tpu_custom_call.1} parent=55 // pred_fallthru
          _
      $region56: #{tpu_custom_call.1} parent=5 // pred_fallthru
        _
    $region6: #{tpu_custom_call.1} parent=1 // loop_footer
      %s22 = sadd.s32 1, %s18
    $region7: #{tpu_custom_call.1} parent=1 // loop_footer_branch
      %17 = sbr.rel target = $region3
    $region8: #{tpu_custom_call.1} parent=1 // loop_exit
      _
    %859 = vsyncpa [#allocation3], 1
    %s860 = scalar_lea.sflag [#allocation3], 1
    %861 = vsyncpa %s860, 1
    %862 = vsyncpa [#allocation6], 1
    %863 = vsyncpa [#allocation4], 1
    %s864 = scalar_lea.sflag [#allocation4], 1
    %865 = vsyncpa %s864, 1

</llo_original>
